<compile_context>
chip_gen: v7x
topology: tpu7x:2x2x1
jax: 0.10.0
libtpu: 0.0.40
codegen_flags: <defaults>
</compile_context>

<pallas_src>
import functools

import jax
import jax.numpy as jnp
from jax.experimental import pallas as pl
from jax.experimental.pallas import tpu as pltpu


def _round_up(x: int, m: int) -> int:
    return ((x + m - 1) // m) * m


# ----------------------------------------------------------------------------
# Pass 1: column-sum reduction over h tiles + fc epilogue on the last step.
# ----------------------------------------------------------------------------
def _colsum_fc_kernel(h_ref, fcw_ref, fcb_ref, g_ref, acc_ref, *, inv_n):
    @pl.when(pl.program_id(0) == 0)
    def _init():
        acc_ref[...] = jnp.zeros_like(acc_ref)

    # Partial column-sum of this row tile (zero-padded rows contribute 0).
    acc_ref[...] += jnp.sum(h_ref[...], axis=0, keepdims=True)

    @pl.when(pl.program_id(0) == pl.num_programs(0) - 1)
    def _finalize():
        mean_h = acc_ref[...] * inv_n                          # [1, I]
        # Tiny GEMV (M=1, K=I) — f32 inputs kept on purpose: the kernel is
        # HBM-bound on reading h, so bf16 MXU inputs buy nothing here and
        # would only cost precision (and v5e has no bf16 VPU anyway).
        g_ref[...] = (
            jnp.dot(mean_h, fcw_ref[...], preferred_element_type=jnp.float32)
            + fcb_ref[...]
        )                                                      # [1, O_pad]


# ----------------------------------------------------------------------------
# Pass 2: broadcast the global feature row to every output row (lane-dense).
# ----------------------------------------------------------------------------
def _broadcast_rows_kernel(g_ref, out_ref):
    out_ref[...] = jnp.broadcast_to(g_ref[...], out_ref.shape)


def additive_attention_readout(h, params, *, row_tile=1024):
    """h: [num_nodes, input_size] f32 -> [num_nodes, output_size] f32."""
    n, input_size = h.shape
    fcw = params["fcw"]                     # [I, O]  (already transposed)
    fcb = params["fcb"]                     # [1, O]
    output_size = fcw.shape[1]

    # Lane-dense output / fc columns: pad O up to a multiple of 128 so every
    # store in the kernels is an unmasked vst; wrapper strips the padding.
    o_pad = _round_up(output_size, 128)
    # Row tile: multiple of 8 sublanes, capped to keep zero-padding waste and
    # the per-grid-step overhead both small.  Tiles are KiB-scale here, far
    # below the scoped-VMEM defaults on all generations.
    tn = min(_round_up(n, 8), row_tile)
    n_pad = _round_up(n, tn)
    num_tiles = n_pad // tn

    h_p = h if n_pad == n else jnp.pad(h, ((0, n_pad - n), (0, 0)))
    fcw_p = jnp.pad(fcw, ((0, 0), (0, o_pad - output_size)))
    fcb_p = jnp.pad(fcb, ((0, 0), (0, o_pad - output_size)))

    inv_n = 1.0 / float(n)   # static: divide by the TRUE node count

    # ---- pass 1: global graph feature [1, O_pad] --------------------------
    g = pl.pallas_call(
        functools.partial(_colsum_fc_kernel, inv_n=inv_n),
        out_shape=jax.ShapeDtypeStruct((1, o_pad), jnp.float32),
        grid_spec=pltpu.PrefetchScalarGridSpec(
            num_scalar_prefetch=0,
            grid=(num_tiles,),
            in_specs=[
                pl.BlockSpec((tn, input_size), lambda i: (i, 0)),   # h tile
                pl.BlockSpec((input_size, o_pad), lambda i: (0, 0)),  # fcw (fetched once)
                pl.BlockSpec((1, o_pad), lambda i: (0, 0)),           # fcb (fetched once)
            ],
            out_specs=pl.BlockSpec((1, o_pad), lambda i: (0, 0)),
            scratch_shapes=[pltpu.VMEM((1, input_size), jnp.float32)],
        ),
        compiler_params=pltpu.CompilerParams(
            dimension_semantics=("arbitrary",)),   # reduction axis
    )(h_p, fcw_p, fcb_p)

    # ---- pass 2: broadcast to every node row (lane-dense stores) ----------
    out_padded = pl.pallas_call(
        _broadcast_rows_kernel,
        out_shape=jax.ShapeDtypeStruct((n_pad, o_pad), jnp.float32),
        grid_spec=pltpu.PrefetchScalarGridSpec(
            num_scalar_prefetch=0,
            grid=(num_tiles,),
            in_specs=[pl.BlockSpec((1, o_pad), lambda i: (0, 0))],
            out_specs=pl.BlockSpec((tn, o_pad), lambda i: (i, 0)),
        ),
        compiler_params=pltpu.CompilerParams(
            dimension_semantics=("parallel",)),    # independent row tiles
    )(g)

    return out_padded[:n, :output_size]


# ----------------------------------------------------------------------------
# Parameter init (shapes match the nn.Module; Linear weights stored transposed
# as [in_features, out_features]).  w1/b1/w2/b2 are kept only so the pure-JAX
# reference can exercise the full (mathematically dead) attn branch.
# ----------------------------------------------------------------------------
def init_params(key, input_size, hidden_size, output_size):
    k1, k2, k3, k4, k5, k6 = jax.random.split(key, 6)

    def uniform(k, shape, bound):
        return jax.random.uniform(k, shape, jnp.float32, -bound, bound)

    fan_in0 = input_size + hidden_size
    w1 = uniform(k1, (fan_in0, hidden_size), 1.0 / jnp.sqrt(fan_in0))
    b1 = uniform(k2, (1, hidden_size), 1.0 / jnp.sqrt(fan_in0))
    w2 = uniform(k3, (hidden_size, 1), 1.0 / jnp.sqrt(hidden_size))
    b2 = uniform(k4, (1, 1), 1.0 / jnp.sqrt(hidden_size))
    xav = jnp.sqrt(6.0 / (input_size + output_size))
    fcw = uniform(k5, (input_size, output_size), xav)
    fcb = uniform(k6, (1, output_size), 1.0 / jnp.sqrt(input_size))
    return {"w1": w1, "b1": b1, "w2": w2, "b2": b2, "fcw": fcw, "fcb": fcb}


def _reference(h, params):
    """Pure-JAX replica of the PyTorch forward (keeps the full attn branch)."""
    n, input_size = h.shape
    hidden_size = params["w1"].shape[0] - input_size
    hq = jnp.concatenate([h, jnp.zeros((n, hidden_size), h.dtype)], axis=1)
    u = jnp.tanh(hq @ params["w1"] + params["b1"])
    s = u @ params["w2"] + params["b2"]              # [n, 1]
    scores = jnp.broadcast_to(s, (n, n))             # constant over axis 1
    attn_w = jax.nn.softmax(scores, axis=1)          # exactly 1/n
    weighted = attn_w @ h                            # every row == mean(h, 0)
    return weighted @ params["fcw"] + params["fcb"]  # [n, output_size]


if __name__ == "__main__":
    num_nodes, input_size, hidden_size, output_size = 8, 16, 32, 8

    key = jax.random.PRNGKey(0)
    k_h, k_p = jax.random.split(key)
    h = jax.random.normal(k_h, (num_nodes, input_size), jnp.float32)
    params = init_params(k_p, input_size, hidden_size, output_size)

    out = additive_attention_readout(h, params)
    jax.block_until_ready(out)
    assert out.shape == (num_nodes, output_size)

    ref = _reference(h, params)
    max_err = float(jnp.max(jnp.abs(out - ref)))
    assert max_err < 1e-5, f"mismatch vs reference: max abs err {max_err}"

    print("KERNEL_OK")
</pallas_src>

<mosaic_0001>
module attributes {stable_mosaic.version = 11 : i64} {
  func.func @_colsum_fc_kernel(%arg0: i32, %arg1: memref<8x16xf32, #tpu.memory_space<vmem>>, %arg2: memref<16x128xf32, #tpu.memory_space<vmem>>, %arg3: memref<1x128xf32, #tpu.memory_space<vmem>>, %arg4: memref<1x128xf32, #tpu.memory_space<vmem>>, %arg5: memref<1x16xf32, #tpu.memory_space<vmem>>) attributes {dimension_semantics = [#tpu.dimension_semantics<arbitrary>], iteration_bounds = array<i64: 1>, scalar_prefetch = 0 : i64, scratch_operands = 1 : i64, tpu.core_type = #tpu.core_type<tc>, window_params = [{transform_indices = @transform_0, window_bounds = array<i64: 8, 16>}, {pipeline_mode = #tpu.pipeline_mode<synchronous>, transform_indices = @transform_1, window_bounds = array<i64: 16, 128>}, {pipeline_mode = #tpu.pipeline_mode<synchronous>, transform_indices = @transform_2, window_bounds = array<i64: 1, 128>}, {pipeline_mode = #tpu.pipeline_mode<synchronous>, transform_indices = @transform_3, window_bounds = array<i64: 1, 128>}]} {
    %c0_i32 = arith.constant 0 : i32
    %0 = arith.cmpi eq, %arg0, %c0_i32 : i32
    %1 = arith.extui %0 : i1 to i32
    %c0_i32_0 = arith.constant 0 : i32
    %2 = arith.cmpi ne, %1, %c0_i32_0 : i32
    scf.if %2 {
      %cst_8 = arith.constant 0.000000e+00 : f32
      %12 = vector.broadcast %cst_8 : f32 to vector<1x16xf32>
      %c0_9 = arith.constant 0 : index
      %c0_10 = arith.constant 0 : index
      %13 = vector.load %arg5[%c0_9, %c0_10] : memref<1x16xf32, #tpu.memory_space<vmem>>, vector<1x16xf32>
      tpu.vector_store %arg5[%c0_9, %c0_10], %12 {strides = array<i32>} : memref<1x16xf32, #tpu.memory_space<vmem>>, vector<1x16xf32>,
    } else {
    }
    %c0 = arith.constant 0 : index
    %c0_1 = arith.constant 0 : index
    %3 = vector.load %arg5[%c0, %c0_1] : memref<1x16xf32, #tpu.memory_space<vmem>>, vector<1x16xf32>
    %c0_2 = arith.constant 0 : index
    %c0_3 = arith.constant 0 : index
    %4 = vector.load %arg1[%c0_2, %c0_3] : memref<8x16xf32, #tpu.memory_space<vmem>>, vector<8x16xf32>
    %cst = arith.constant dense<0.000000e+00> : vector<16xf32>
    %5 = vector.multi_reduction <add>, %4, %cst [0] : vector<8x16xf32> to vector<16xf32>
    %6 = vector.shape_cast %5 : vector<16xf32> to vector<1x16xf32>
    %7 = arith.addf %3, %6 : vector<1x16xf32>
    %c0_4 = arith.constant 0 : index
    %c0_5 = arith.constant 0 : index
    %8 = vector.load %arg5[%c0_4, %c0_5] : memref<1x16xf32, #tpu.memory_space<vmem>>, vector<1x16xf32>
    tpu.vector_store %arg5[%c0_4, %c0_5], %7 {strides = array<i32>} : memref<1x16xf32, #tpu.memory_space<vmem>>, vector<1x16xf32>,
    %c0_i32_6 = arith.constant 0 : i32
    %9 = arith.cmpi eq, %arg0, %c0_i32_6 : i32
    %10 = arith.extui %9 : i1 to i32
    %c0_i32_7 = arith.constant 0 : i32
    %11 = arith.cmpi ne, %10, %c0_i32_7 : i32
    scf.if %11 {
      %c0_8 = arith.constant 0 : index
      %c0_9 = arith.constant 0 : index
      %12 = vector.load %arg5[%c0_8, %c0_9] : memref<1x16xf32, #tpu.memory_space<vmem>>, vector<1x16xf32>
      %cst_10 = arith.constant 1.250000e-01 : f32
      %13 = vector.broadcast %cst_10 : f32 to vector<1x16xf32>
      %14 = arith.mulf %12, %13 : vector<1x16xf32>
      %c0_11 = arith.constant 0 : index
      %c0_12 = arith.constant 0 : index
      %15 = vector.load %arg2[%c0_11, %c0_12] : memref<16x128xf32, #tpu.memory_space<vmem>>, vector<16x128xf32>
      %cst_13 = arith.constant dense<0.000000e+00> : vector<1x128xf32>
      %16 = tpu.matmul %14, %15, %cst_13 {dimension_numbers = #tpu.dot_dimension_numbers<[1], [0], [0], [1], [0, 0, 1, 1], [], []>} : vector<1x16xf32>, vector<16x128xf32>, vector<1x128xf32> -> vector<1x128xf32>
      %c0_14 = arith.constant 0 : index
      %c0_15 = arith.constant 0 : index
      %17 = vector.load %arg3[%c0_14, %c0_15] : memref<1x128xf32, #tpu.memory_space<vmem>>, vector<1x128xf32>
      %18 = arith.addf %16, %17 : vector<1x128xf32>
      %c0_16 = arith.constant 0 : index
      %c0_17 = arith.constant 0 : index
      %19 = vector.load %arg4[%c0_16, %c0_17] : memref<1x128xf32, #tpu.memory_space<vmem>>, vector<1x128xf32>
      tpu.vector_store %arg4[%c0_16, %c0_17], %18 {strides = array<i32>} : memref<1x128xf32, #tpu.memory_space<vmem>>, vector<1x128xf32>,
    } else {
    }
    return
  }
  func.func @transform_0(%arg0: i32) -> (i32, i32) {
    %c0_i32 = arith.constant 0 : i32
    %c0_i32_0 = arith.constant 0 : i32
    return %arg0, %c0_i32 : i32, i32
  }
  func.func @transform_1(%arg0: i32) -> (i32, i32) {
    %c0_i32 = arith.constant 0 : i32
    %c0_i32_0 = arith.constant 0 : i32
    %c0_i32_1 = arith.constant 0 : i32
    return %c0_i32, %c0_i32_0 : i32, i32
  }
  func.func @transform_2(%arg0: i32) -> (i32, i32) {
    %c0_i32 = arith.constant 0 : i32
    %c0_i32_0 = arith.constant 0 : i32
    %c0_i32_1 = arith.constant 0 : i32
    return %c0_i32, %c0_i32_0 : i32, i32
  }
  func.func @transform_3(%arg0: i32) -> (i32, i32) {
    %c0_i32 = arith.constant 0 : i32
    %c0_i32_0 = arith.constant 0 : i32
    %c0_i32_1 = arith.constant 0 : i32
    return %c0_i32, %c0_i32_0 : i32, i32
  }
}

</mosaic_0001>

<llo_original>
// kernel: tpu_custom_call.1
$region0: #{tpu_custom_call.1}
  #allocation0 [shape = 'u32[]', space=smem, size = 0x4, offset = 0x4, fixed_abs, tag = 'smem constant byte address 0x4 - core index']
  #allocation1 [shape = 'u32[144,128]{1,0:T(1,128)}', space=vmem, size = 0x12000, scoped, tag = 'internal scratch']
  #allocation2 [shape = 'f32[1,16]{1,0:T(1,128)}', space=vmem, size = 0x200, scoped, tag = 'scratch operand']
  %s0 = inlined_call_operand.hbm [shape: f32[8,16], index: 0, kind: input, shape index: {}]
  %s1 = inlined_call_operand.hbm [shape: f32[16,128], index: 1, kind: input, shape index: {}]
  %s2 = inlined_call_operand.vmem [shape: f32[1,128], index: 2, kind: input, shape index: {}]
  %s3 = inlined_call_operand.hbm [shape: f32[1,128], index: 3, kind: output, shape index: {}]
  %s4 = sld [smem:[#allocation0]]
  $region38: #{tpu_custom_call.1} parent=0
    _
  %s6 = ssub.s32 1, %s4
  %s7 = scalar_select 0, %s6, %s4
  $region1: #{tpu_custom_call.1} parent=0
    #allocation3 [shape = 'u8[4096]{0}', space=vmem, size = 0x1000, scoped, tag = 'input window, operand 0, single buffered']
    #allocation4 [shape = 's32[1]{0}', space=sflag, size = 0x4, scoped, tag = 'scoped memory for tpu_custom_call.1']
    #allocation5 [shape = 's32[1]{0}', space=sflag, size = 0x4, scoped, tag = 'scoped memory for tpu_custom_call.1']
    #allocation6 [shape = 'u8[8192]{0}', space=vmem, size = 0x2000, scoped, tag = 'input window, operand 1, single buffered']
    #allocation7 [shape = 's32[1]{0}', space=sflag, size = 0x4, scoped, tag = 'scoped memory for tpu_custom_call.1']
    #allocation8 [shape = 'u8[512]{0}', space=vmem, size = 0x400, scoped, tag = 'output window, operand 0, single buffered']
    %8 = vsyncpa [#allocation4], 0
    %9 = vsyncpa [#allocation7], 0
    %10 = vsyncpa [#allocation5], 0
    // Predicated region
    $region2: #{tpu_custom_call.1} parent=1 // pred_check
      _
    $region3: #{tpu_custom_call.1} parent=1 // pred_check_branch
      %12 = sbr.rel (0) target = $region5
    $region4: #{tpu_custom_call.1} parent=1 // pred_region
      %s14 = ssub.s32 128, 128
      %15 = vsyncadd [#allocation4], %s14
      %s17 = sshll.u32 [#allocation3], 4
      %s18 = int_to_ptr.vmem [resolvable:$true] %s17
      %20 = dma.hbm_to_vmem [thread:$0]  %s0, 128, %s18, [#allocation4]
    $region5: #{tpu_custom_call.1} parent=1 // pred_fallthru
      _
    // Predicated region
    $region6: #{tpu_custom_call.1} parent=1 // pred_check
      _
    $region7: #{tpu_custom_call.1} parent=1 // pred_check_branch
      %22 = sbr.rel (0) target = $region9
    $region8: #{tpu_custom_call.1} parent=1 // pred_region
      %s24 = ssub.s32 256, 256
      %25 = vsyncadd [#allocation7], %s24
      %s26 = sshll.u32 [#allocation6], 4
      %s27 = int_to_ptr.vmem [resolvable:$true] %s26
      %32 = dma.hbm_to_vmem [thread:$0]  %s1, 256, %s27, [#allocation7], 128, 128, 8
    $region9: #{tpu_custom_call.1} parent=1 // pred_fallthru
      _
    // Predicated region
    $region10: #{tpu_custom_call.1} parent=1 // pred_check
      _
    $region11: #{tpu_custom_call.1} parent=1 // pred_check_branch
      %34 = sbr.rel (0) target = $region13
    $region12: #{tpu_custom_call.1} parent=1 // pred_region
      _
    $region13: #{tpu_custom_call.1} parent=1 // pred_fallthru
      _
    // Predicated region
    $region14: #{tpu_custom_call.1} parent=1 // pred_check
      _
    $region15: #{tpu_custom_call.1} parent=1 // pred_check_branch
      %36 = sbr.rel (0) target = $region17
    $region16: #{tpu_custom_call.1} parent=1 // pred_region
      %37 = dma.done [#allocation4], 128
    $region17: #{tpu_custom_call.1} parent=1 // pred_fallthru
      _
    // Predicated region
    $region18: #{tpu_custom_call.1} parent=1 // pred_check
      _
    $region19: #{tpu_custom_call.1} parent=1 // pred_check_branch
      %39 = sbr.rel (0) target = $region21
    $region20: #{tpu_custom_call.1} parent=1 // pred_region
      %40 = dma.done [#allocation7], 256
    $region21: #{tpu_custom_call.1} parent=1 // pred_fallthru
      _
    %p41 = scmp.eq.s32.totalorder 0, 0
    // Predicated region
    $region22: #{tpu_custom_call.1} parent=1 // pred_check
      %p42 = pneg %p41
    $region23: #{tpu_custom_call.1} parent=1 // pred_check_branch
      %44 = sbr.rel (%p42) target = $region25
    $region24: #{tpu_custom_call.1} parent=1 // pred_region
      %vm45 = vcmask 122880
      %46 = vst.msk [vmem:[#allocation2] sm:$0x1] %vm45, 0.0
    $region25: #{tpu_custom_call.1} parent=1 // pred_fallthru
      _
    %v47 = vld [vmem:[#allocation2] sm:$0x1]
    %v48 = vld [vmem:[#allocation3] sm:$0xff]
    %vm49 = vcmask 130048
    %v50 = vsel %vm49, %v48, 0.0
    %v51 = vrot.slane %v50, 4
    %v52 = vadd.f32 %v50, %v51
    %v53 = vrot.slane %v52, 2
    %v54 = vadd.f32 %v52, %v53
    %v55 = vrot.slane %v54, 1
    %v56 = vadd.f32 %v54, %v55
    %v57 = vadd.f32 %v47, %v56
    %vm58 = vcmask 122880
    %59 = vst.msk [vmem:[#allocation2] sm:$0x1] %vm58, %v57
    // Predicated region
    $region26: #{tpu_custom_call.1} parent=1 // pred_check
      %p60 = pneg %p41
    $region27: #{tpu_custom_call.1} parent=1 // pred_check_branch
      %62 = sbr.rel (%p60) target = $region29
    $region28: #{tpu_custom_call.1} parent=1 // pred_region
      %v63 = vld [vmem:[#allocation2] sm:$0x1]
      %v64 = vmul.f32 %v63, 0.125
      %v65 = vld [vmem:[#allocation6] sm:$0xff]
      %v66 = vld [vmem:[#allocation6 + $0x8] sm:$0xff]
      %v67 = vld [vmem:[%s2] sm:$0x1]
      %v69 = vsel %vm49, %v64, 0
      %71 = vmatprep.subr.mxu0 0.0
      %72 = vmatpush1.msra.mxu0 %v65
      %73 = vmatprep.subr.mxu0 0.0
      %74 = vmatpush1.msra.mxu0 %v66
      %75 = vmatprep.subr.mxu0 0.0
      %76 = vmatpush1.msra.mxu0 0.0
      %77 = vmatprep.subr.mxu0 0.0
      %78 = vmatpush1.msra.mxu0 0.0
      %79 = vmatprep.subr.mxu0 0.0
      %80 = vmatpush1.msra.mxu0 0.0
      %81 = vmatprep.subr.mxu0 0.0
      %82 = vmatpush1.msra.mxu0 0.0
      %83 = vmatprep.subr.mxu0 0.0
      %84 = vmatpush1.msra.mxu0 0.0
      %85 = vmatprep.subr.mxu0 0.0
      %86 = vmatpush1.msra.mxu0 0.0
      %87 = vmatprep.subr.mxu0 0.0
      %88 = vmatpush1.msra.mxu0 0.0
      %89 = vmatprep.subr.mxu0 0.0
      %90 = vmatpush1.msra.mxu0 0.0
      %91 = vmatprep.subr.mxu0 0.0
      %92 = vmatpush1.msra.mxu0 0.0
      %93 = vmatprep.subr.mxu0 0.0
      %94 = vmatpush1.msra.mxu0 0.0
      %95 = vmatprep.subr.mxu0 0.0
      %96 = vmatpush1.msra.mxu0 0.0
      %97 = vmatprep.subr.mxu0 0.0
      %98 = vmatpush1.msra.mxu0 0.0
      %99 = vmatprep.subr.mxu0 0.0
      %100 = vmatpush1.msra.mxu0 0.0
      %101 = vmatprep.subr.mxu0 0.0
      %102 = vmatpush1.msra.mxu0 0.0
      %103 = vmatprep.subr.mxu0 0.0
      %104 = vmatpush1.msra.mxu0 0.0
      %105 = vmatprep.subr.mxu0 0.0
      %106 = vmatpush1.msra.mxu0 0.0
      %107 = vmatprep.subr.mxu0 0.0
      %108 = vmatpush1.msra.mxu0 0.0
      %109 = vmatprep.subr.mxu0 0.0
      %110 = vmatpush1.msra.mxu0 0.0
      %111 = vmatprep.subr.mxu0 0.0
      %112 = vmatpush1.msra.mxu0 0.0
      %113 = vmatprep.subr.mxu0 0.0
      %114 = vmatpush1.msra.mxu0 0.0
      %115 = vmatprep.subr.mxu0 0.0
      %116 = vmatpush1.msra.mxu0 0.0
      %117 = vmatprep.subr.mxu0 0.0
      %118 = vmatpush1.msra.mxu0 0.0
      %119 = vmatprep.subr.mxu0 0.0
      %120 = vmatpush1.msra.mxu0 0.0
      %121 = vmatprep.subr.mxu0 0.0
      %122 = vmatpush1.msra.mxu0 0.0
      %123 = vmatprep.subr.mxu0 0.0
      %124 = vmatpush1.msra.mxu0 0.0
      %125 = vmatprep.subr.mxu0 0.0
      %126 = vmatpush1.msra.mxu0 0.0
      %127 = vmatprep.subr.mxu0 0.0
      %128 = vmatpush1.msra.mxu0 0.0
      %129 = vmatprep.subr.mxu0 0.0
      %130 = vmatpush1.msra.mxu0 0.0
      %131 = vmatprep.subr.mxu0 0.0
      %132 = vmatpush1.msra.mxu0 0.0
      %133 = vmatprep.subr.mxu0 0.0
      %134 = vmatpush1.msra.mxu0 0.0
      %135 = vmatprep.mubr.f32.mxu0 0.0
      %136 = vmatmul.mubr.f32.gmra.mrb[0].mxu0 %v69
      %v137 = vpop.f32.mrb[0].mxu0
      %v138 = vadd.f32 %v67, %v137
      %v139 = vpop.f32.mrb[0].mxu0
      %140 = vdwg.mxu0
      %141 = vst [vmem:[#allocation8] sm:$0x1] %v138
    $region29: #{tpu_custom_call.1} parent=1 // pred_fallthru
      _
    // Predicated region
    $region30: #{tpu_custom_call.1} parent=1 // pred_check
      _
    $region31: #{tpu_custom_call.1} parent=1 // pred_check_branch
      %143 = sbr.rel (0) target = $region33
    $region32: #{tpu_custom_call.1} parent=1 // pred_region
      %s145 = ssub.s32 16, 16
      %146 = vsyncadd [#allocation5], %s145
      %s148 = sshll.u32 [#allocation8], 4
      %s149 = int_to_ptr.vmem [resolvable:$true] %s148
      %151 = dma.vmem_to_hbm [thread:$0]  %s149, 16, %s3, [#allocation5]
    $region33: #{tpu_custom_call.1} parent=1 // pred_fallthru
      _
    // Predicated region
    $region34: #{tpu_custom_call.1} parent=1 // pred_check
      _
    $region35: #{tpu_custom_call.1} parent=1 // pred_check_branch
      %153 = sbr.rel (0) target = $region37
    $region36: #{tpu_custom_call.1} parent=1 // pred_region
      %154 = dma.done [#allocation5], 16
    $region37: #{tpu_custom_call.1} parent=1 // pred_fallthru
      _
    %155 = vsyncpa [#allocation4], 1
    %156 = vsyncpa [#allocation7], 1
    %157 = vsyncpa [#allocation5], 1

</llo_original>
